<compile_context>
chip_gen: v5e
topology: v5e:2x2
jax: 0.10.0
libtpu: 0.0.40
codegen_flags: <defaults>
</compile_context>

<pallas_src>
import functools

import jax
import jax.numpy as jnp
from jax.experimental import pallas as pl
from jax.experimental.pallas import tpu as pltpu


def _attention_head_kernel(x_ref, w_ref, bw_ref, v_ref, bv_ref, o_ref, *,
                           use_bf16_matmul):
    # x_ref : (BB, S, D)  one batch tile
    # w_ref : (D, H)      W.weight^T
    # bw_ref: (1, H)      W.bias
    # v_ref : (1, H)      V.weight row
    # bv_ref: (1,)        V.bias (SMEM scalar)
    # o_ref : (BB, 1, D)  context vectors
    x3 = x_ref[...]                                   # (BB, S, D)
    bb, S, D = x3.shape
    H = w_ref.shape[1]

    # ---- att = tanh(x @ W^T + b_w): one (BB*S, D) @ (D, H) MXU matmul ----
    xflat = x3.reshape(bb * S, D)                     # leading-dim merge (free when S % 8 == 0)
    w = w_ref[...]
    if use_bf16_matmul:
        lhs, rhs = xflat.astype(jnp.bfloat16), w.astype(jnp.bfloat16)
    else:
        lhs, rhs = xflat, w
    att = jnp.tanh(
        jnp.dot(lhs, rhs, preferred_element_type=jnp.float32) + bw_ref[...]
    )                                                 # (BB*S, H) f32; tanh stays f32 (v5e EUP has no bf16)

    # ---- scores, lane-dense along the sequence axis: (BB, 1, S) ----
    att3 = att.reshape(bb, S, H)                      # sublane split (free when S % 8 == 0)
    v_b = jnp.broadcast_to(v_ref[...].reshape(1, 1, H), (bb, 1, H))
    scores = jnp.einsum("bqh,bsh->bqs", v_b, att3,
                        preferred_element_type=jnp.float32) + bv_ref[0]   # (BB, 1, S)

    # ---- per-batch softmax over the sequence (lane) axis — linear in BB ----
    smax = jnp.max(scores, axis=-1, keepdims=True)    # (BB, 1, 1)
    p = jnp.exp(scores - smax)                        # (BB, 1, S)
    denom = jnp.sum(p, axis=-1, keepdims=True)        # (BB, 1, 1)
    # Exact reciprocal keeps the 1e-5 parity check tight in the f32 path;
    # pl.reciprocal(approx=True) (EUP vrcp) is essentially free if relaxed.
    attw = p * pl.reciprocal(denom, approx=False)     # (BB, 1, S)

    # ---- context: per-batch (1, S) @ (S, D) MXU contraction -> (BB, 1, D) ----
    if use_bf16_matmul:
        ctx = jnp.einsum("bqs,bsd->bqd",
                         attw.astype(jnp.bfloat16), x3.astype(jnp.bfloat16),
                         preferred_element_type=jnp.float32)
    else:
        ctx = jnp.einsum("bqs,bsd->bqd", attw, x3.astype(jnp.float32),
                         preferred_element_type=jnp.float32)

    # TODO(synk): nn.Dropout(0.3) is identity in eval mode; training-mode dropout
    # (pltpu.prng_seed / prng_random_bits masking) is not applied.
    o_ref[...] = ctx.astype(o_ref.dtype)


def _pick_batch_block(B, S, D, itemsize):
    """~512-2048 rows of the (rows, D) x tile per grid step (few-MiB tiles so
    BlockSpec double-buffering hides the HBM DMA), grid >= 2 whenever B allows
    it (pipelining + v7x dual-TensorCore sharding), tile capped so the
    double-buffered footprint stays well inside v7x's 64 MiB VMEM."""
    target_rows = 1024
    max_tile_bytes = 8 * 1024 * 1024
    rows_by_bytes = max(1, max_tile_bytes // max(1, D * itemsize))
    rows = min(target_rows, rows_by_bytes)
    bb = max(1, min(B, rows // max(1, S)))
    if B >= 2:
        bb = min(bb, max(1, B // 2))        # guarantee at least two grid steps
    while bb > 1 and B % bb:
        bb -= 1                             # snap to a divisor of B
    # NOTE: for peak MXU fill, prefer bb*S a multiple of 128 (v5e) / 256 (v6e/v7x)
    # when B's divisors allow it; not enforced here.
    return bb


def attention_head(x, w, bw, v_row, bv, *, batch_block=None, use_bf16_matmul=False):
    """x: (B,S,D); w: (D,H)=W.weight^T; bw: (1,H)=W.bias; v_row: (1,H)=V.weight; bv: (1,)=V.bias."""
    B, S, D = x.shape
    H = w.shape[1]
    itemsize = jnp.dtype(x.dtype).itemsize

    if batch_block is None:
        batch_block = _pick_batch_block(B, S, D, itemsize)
    assert 1 <= batch_block <= B and B % batch_block == 0, (B, batch_block)
    grid = (B // batch_block,)

    bv = bv.reshape(1)

    # Scoped-VMEM budget: double-buffered x/out tiles + (default double-buffered)
    # weights + f32 temporaries, raised above the 16/32 MiB scoped defaults but
    # capped at v7x's 64 MiB physical VMEM.
    x_tile_bytes = batch_block * S * D * itemsize
    est = (2 * x_tile_bytes                          # x tile, double-buffered
           + 2 * (D * H + 2 * H) * 4                 # W^T, b_w, V row (default 2x-buffered)
           + 2 * batch_block * D * itemsize          # out tile, double-buffered
           + batch_block * S * (D + 2 * H) * 4       # f32 temporaries (att, casts, context)
           + (4 << 20))                              # headroom
    vmem_limit = int(min(max(est, 32 * 1024 * 1024), 64 * 1024 * 1024))

    kernel = functools.partial(_attention_head_kernel, use_bf16_matmul=use_bf16_matmul)

    out = pl.pallas_call(
        kernel,
        out_shape=jax.ShapeDtypeStruct((B, 1, D), x.dtype),
        grid_spec=pltpu.PrefetchScalarGridSpec(
            num_scalar_prefetch=0,
            grid=grid,
            in_specs=[
                pl.BlockSpec((batch_block, S, D), lambda i: (i, 0, 0)),   # x tile
                # Constant-index weight/bias blocks. (On v7x, pipeline_mode=
                # pl.Buffered(1) would drop their redundant second buffer.)
                pl.BlockSpec((D, H), lambda i: (0, 0)),                   # W^T
                pl.BlockSpec((1, H), lambda i: (0, 0)),                   # b_w
                pl.BlockSpec((1, H), lambda i: (0, 0)),                   # V row
                pl.BlockSpec(memory_space=pltpu.MemorySpace.SMEM),        # b_v scalar
            ],
            out_specs=pl.BlockSpec((batch_block, 1, D), lambda i: (i, 0, 0)),
        ),
        compiler_params=pltpu.CompilerParams(
            dimension_semantics=("parallel",),
            vmem_limit_bytes=vmem_limit,
        ),
    )(x, w, bw, v_row, bv)

    return out.reshape(B, D)


def reference(x, w, bw, v_row, bv):
    att = jnp.tanh(x @ w + bw)                 # (B, S, H)
    score = att @ v_row.T + bv[0]              # (B, S, 1)
    attw = jax.nn.softmax(score, axis=1)       # softmax over sequence dim
    ctx = jnp.sum(attw * x, axis=1)            # (B, D)
    return ctx


if __name__ == "__main__":
    # Small shapes consistent with the module: batch=2, seq=8, in_size=32, hidden=16
    B, S, D, H = 2, 8, 32, 16
    key = jax.random.PRNGKey(0)
    k_x, k_w, k_bw, k_v, k_bv = jax.random.split(key, 5)

    x = jax.random.normal(k_x, (B, S, D), dtype=jnp.float32)

    # Deterministic "Linear" parameters: W (in->hidden) stored transposed, V (hidden->1)
    # stored as its natural (1, hidden) weight row.
    w = jax.random.normal(k_w, (D, H), dtype=jnp.float32) * (1.0 / jnp.sqrt(D))
    bw = jax.random.normal(k_bw, (1, H), dtype=jnp.float32) * 0.01
    v_row = jax.random.normal(k_v, (1, H), dtype=jnp.float32) * (1.0 / jnp.sqrt(H))
    bv = jax.random.normal(k_bv, (1,), dtype=jnp.float32) * 0.01

    # f32 path (multi-step grid at the toy shape: batch_block=1 -> grid=(2,))
    out = attention_head(x, w, bw, v_row, bv)
    out = jax.block_until_ready(out)

    ref = reference(x, w, bw, v_row, bv)
    assert out.shape == (B, D), out.shape
    assert jnp.allclose(out, ref, atol=1e-5, rtol=1e-5), float(jnp.max(jnp.abs(out - ref)))

    # bf16 MXU-operand path (review item): same semantics, looser tolerance.
    out_bf16 = jax.block_until_ready(
        attention_head(x, w, bw, v_row, bv, use_bf16_matmul=True))
    assert jnp.allclose(out_bf16, ref, atol=3e-2, rtol=3e-2), \
        float(jnp.max(jnp.abs(out_bf16 - ref)))

    print("KERNEL_OK")
</pallas_src>

<mosaic_0001>
module attributes {stable_mosaic.version = 11 : i64} {
  func.func @_attention_head_kernel(%arg0: i32, %arg1: memref<1x8x32xf32, #tpu.memory_space<vmem>>, %arg2: memref<32x16xf32, #tpu.memory_space<vmem>>, %arg3: memref<1x16xf32, #tpu.memory_space<vmem>>, %arg4: memref<1x16xf32, #tpu.memory_space<vmem>>, %arg5: memref<1xf32, #tpu.memory_space<smem>>, %arg6: memref<1x1x32xf32, #tpu.memory_space<vmem>>) attributes {dimension_semantics = [#tpu.dimension_semantics<parallel>], iteration_bounds = array<i64: 2>, scalar_prefetch = 0 : i64, scratch_operands = 0 : i64, tpu.core_type = #tpu.core_type<tc>, window_params = [{transform_indices = @transform_0, window_bounds = array<i64: 1, 8, 32>}, {pipeline_mode = #tpu.pipeline_mode<synchronous>, transform_indices = @transform_1, window_bounds = array<i64: 32, 16>}, {pipeline_mode = #tpu.pipeline_mode<synchronous>, transform_indices = @transform_2, window_bounds = array<i64: 1, 16>}, {pipeline_mode = #tpu.pipeline_mode<synchronous>, transform_indices = @transform_3, window_bounds = array<i64: 1, 16>}, {transform_indices = @transform_4, window_bounds = array<i64: 1>}, {transform_indices = @transform_5, window_bounds = array<i64: 1, 1, 32>}]} {
    %c0 = arith.constant 0 : index
    %c0_0 = arith.constant 0 : index
    %c0_1 = arith.constant 0 : index
    %0 = vector.load %arg1[%c0, %c0_0, %c0_1] : memref<1x8x32xf32, #tpu.memory_space<vmem>>, vector<1x8x32xf32>
    %1 = vector.shape_cast %0 : vector<1x8x32xf32> to vector<8x32xf32>
    %c0_2 = arith.constant 0 : index
    %c0_3 = arith.constant 0 : index
    %2 = vector.load %arg2[%c0_2, %c0_3] : memref<32x16xf32, #tpu.memory_space<vmem>>, vector<32x16xf32>
    %cst = arith.constant dense<0.000000e+00> : vector<8x16xf32>
    %3 = tpu.matmul %1, %2, %cst {dimension_numbers = #tpu.dot_dimension_numbers<[1], [0], [0], [1], [0, 0, 1, 1], [], []>} : vector<8x32xf32>, vector<32x16xf32>, vector<8x16xf32> -> vector<8x16xf32>
    %c0_4 = arith.constant 0 : index
    %c0_5 = arith.constant 0 : index
    %4 = vector.load %arg3[%c0_4, %c0_5] : memref<1x16xf32, #tpu.memory_space<vmem>>, vector<1x16xf32>
    %5 = vector.broadcast %4 : vector<1x16xf32> to vector<8x16xf32>
    %6 = arith.addf %3, %5 : vector<8x16xf32>
    %7 = math.tanh %6 : vector<8x16xf32>
    %8 = vector.shape_cast %7 : vector<8x16xf32> to vector<1x8x16xf32>
    %c0_6 = arith.constant 0 : index
    %c0_7 = arith.constant 0 : index
    %9 = vector.load %arg4[%c0_6, %c0_7] : memref<1x16xf32, #tpu.memory_space<vmem>>, vector<1x16xf32>
    %10 = vector.shape_cast %9 : vector<1x16xf32> to vector<1x1x16xf32>
    "tpu.trace_start"() <{level = 10 : i32, message = "bqh,bsh->bqs"}> : () -> ()
    %cst_8 = arith.constant dense<0.000000e+00> : vector<1x1x8xf32>
    %11 = tpu.matmul %10, %8, %cst_8 {dimension_numbers = #tpu.dot_dimension_numbers<[2], [2], [1], [1], [0, 0, 0, 1, 1, 1], [0], [0]>} : vector<1x1x16xf32>, vector<1x8x16xf32>, vector<1x1x8xf32> -> vector<1x1x8xf32>
    "tpu.trace_stop"() : () -> ()
    %c0_9 = arith.constant 0 : index
    %12 = memref.load %arg5[%c0_9] : memref<1xf32, #tpu.memory_space<smem>>
    %13 = vector.broadcast %12 : f32 to vector<1x1x8xf32>
    %14 = arith.addf %11, %13 : vector<1x1x8xf32>
    %cst_10 = arith.constant dense<0xFF800000> : vector<1x1xf32>
    %15 = vector.multi_reduction <maximumf>, %14, %cst_10 [2] : vector<1x1x8xf32> to vector<1x1xf32>
    %16 = vector.shape_cast %15 : vector<1x1xf32> to vector<1x1x1xf32>
    %17 = vector.broadcast %16 : vector<1x1x1xf32> to vector<1x1x8xf32>
    %18 = arith.subf %14, %17 : vector<1x1x8xf32>
    %19 = math.exp %18 : vector<1x1x8xf32>
    %cst_11 = arith.constant dense<0.000000e+00> : vector<1x1xf32>
    %20 = vector.multi_reduction <add>, %19, %cst_11 [2] : vector<1x1x8xf32> to vector<1x1xf32>
    %21 = vector.shape_cast %20 : vector<1x1xf32> to vector<1x1x1xf32>
    %22 = tpu.reciprocal %21 : vector<1x1x1xf32> -> vector<1x1x1xf32>
    %23 = vector.broadcast %22 : vector<1x1x1xf32> to vector<1x1x8xf32>
    %24 = arith.mulf %19, %23 : vector<1x1x8xf32>
    "tpu.trace_start"() <{level = 10 : i32, message = "bqs,bsd->bqd"}> : () -> ()
    %cst_12 = arith.constant dense<0.000000e+00> : vector<1x1x32xf32>
    %25 = tpu.matmul %24, %0, %cst_12 {dimension_numbers = #tpu.dot_dimension_numbers<[2], [1], [1], [2], [0, 0, 0, 1, 1, 2], [0], [0]>} : vector<1x1x8xf32>, vector<1x8x32xf32>, vector<1x1x32xf32> -> vector<1x1x32xf32>
    "tpu.trace_stop"() : () -> ()
    %c0_13 = arith.constant 0 : index
    %c0_14 = arith.constant 0 : index
    %c0_15 = arith.constant 0 : index
    %26 = vector.load %arg6[%c0_13, %c0_14, %c0_15] : memref<1x1x32xf32, #tpu.memory_space<vmem>>, vector<1x1x32xf32>
    tpu.vector_store %arg6[%c0_13, %c0_14, %c0_15], %25 {strides = array<i32>} : memref<1x1x32xf32, #tpu.memory_space<vmem>>, vector<1x1x32xf32>,
    return
  }
  func.func @transform_0(%arg0: i32) -> (i32, i32, i32) {
    %c0_i32 = arith.constant 0 : i32
    %c0_i32_0 = arith.constant 0 : i32
    %c0_i32_1 = arith.constant 0 : i32
    return %arg0, %c0_i32, %c0_i32_0 : i32, i32, i32
  }
  func.func @transform_1(%arg0: i32) -> (i32, i32) {
    %c0_i32 = arith.constant 0 : i32
    %c0_i32_0 = arith.constant 0 : i32
    %c0_i32_1 = arith.constant 0 : i32
    return %c0_i32, %c0_i32_0 : i32, i32
  }
  func.func @transform_2(%arg0: i32) -> (i32, i32) {
    %c0_i32 = arith.constant 0 : i32
    %c0_i32_0 = arith.constant 0 : i32
    %c0_i32_1 = arith.constant 0 : i32
    return %c0_i32, %c0_i32_0 : i32, i32
  }
  func.func @transform_3(%arg0: i32) -> (i32, i32) {
    %c0_i32 = arith.constant 0 : i32
    %c0_i32_0 = arith.constant 0 : i32
    %c0_i32_1 = arith.constant 0 : i32
    return %c0_i32, %c0_i32_0 : i32, i32
  }
  func.func @transform_4(%arg0: i32) -> i32 {
    %c0_i32 = arith.constant 0 : i32
    %c0_i32_0 = arith.constant 0 : i32
    return %c0_i32 : i32
  }
  func.func @transform_5(%arg0: i32) -> (i32, i32, i32) {
    %c0_i32 = arith.constant 0 : i32
    %c0_i32_0 = arith.constant 0 : i32
    %c0_i32_1 = arith.constant 0 : i32
    return %arg0, %c0_i32, %c0_i32_0 : i32, i32, i32
  }
}

</mosaic_0001>

<llo_original>
// kernel: tpu_custom_call.1
$region0: #{tpu_custom_call.1}
  #allocation0 [shape = 'u32[]', space=smem, size = 0x4, offset = 0x4, fixed_abs, tag = 'smem constant byte address 0x4 - core index']
  #allocation1 [shape = 'u32[72,128]{1,0:T(1,128)}', space=vmem, size = 0x9000, scoped, tag = 'internal scratch']
  #allocation2 [shape = 'f32[1]{0:T(128)S(6)}', space=smem, size = 0x200, scoped, tag = 'scoped memory for tpu_custom_call.1']
  %s0 = inlined_call_operand.vmem [shape: f32[2,8,32], index: 0, kind: input, shape index: {}]
  %s1 = inlined_call_operand.vmem [shape: f32[32,16], index: 1, kind: input, shape index: {}]
  %s2 = inlined_call_operand.vmem [shape: f32[1,16], index: 2, kind: input, shape index: {}]
  %s3 = inlined_call_operand.vmem [shape: f32[1,16], index: 3, kind: input, shape index: {}]
  %s4 = inlined_call_operand.<no memory space> [shape: f32[1], index: 4, kind: input, shape index: {}]
  %s5 = inlined_call_operand.hbm [shape: f32[2,1,32], index: 5, kind: output, shape index: {}]
  %s6 = sld [smem:[#allocation0]]
  $region53: #{tpu_custom_call.1} parent=0
    _
  %s8 = ssub.s32 1, %s6
  %s9 = scalar_select 0, %s8, %s6
  %10 = sst [smem:[#allocation2]] %s4
  $region1: #{tpu_custom_call.1} parent=0
    #allocation3 [shape = 'u8[1024]{0}', space=vmem, size = 0x400, scoped, tag = 'output window, operand 0']
    #allocation4 [shape = 's32[2]{0}', space=sflag, size = 0x8, scoped, tag = 'scoped memory for tpu_custom_call.1']
    %11 = vsyncpa [#allocation4], 0
    %s12 = scalar_lea.sflag [#allocation4], 1
    %13 = vsyncpa %s12, 0
    loop: start=0, step=1, limit=4
    $region2: #{tpu_custom_call.1} parent=1 // loop_pre_header
      _
    $region3: #{tpu_custom_call.1} parent=1 // loop_header
      %s15 = sphi 0, %s19
      %p16 = scmp.ge.s32.totalorder %s15, 4
      %s25 = sphi 0, %s27
      %s28 = sphi 0, %s25
      %s29 = sphi 0, %s28
      %s45 = sphi 0, %s29
      %s49 = sphi 0, %s49
      %s51 = sphi 0, %s49
      %s52 = sphi 0, %s51
      %s66 = sphi 0, %s52
      %s70 = sphi 0, %s70
      %s72 = sphi 0, %s70
      %s73 = sphi 0, %s72
      %s87 = sphi 0, %s73
      %s91 = sphi 0, %s91
      %s93 = sphi 0, %s91
      %s94 = sphi 0, %s93
      %s108 = sphi 0, %s94
      %s112 = sphi 0, %s112
      %s114 = sphi 0, %s112
      %s115 = sphi 0, %s114
      %s129 = sphi 0, %s115
      %s135 = sphi 0, %s137
      %s138 = sphi 0, %s135
      %s139 = sphi 0, %s138
      %s155 = sphi 0, %s139
    $region4: #{tpu_custom_call.1} parent=1 // loop_header_branch
      %18 = sbr.rel (%p16) target = $region8
    $region5: #{tpu_custom_call.1} parent=1 // loop_body
      %s20 = ssub.s32 %s15, 1
      %s21 = ssub.s32 %s15, 2
      %s22 = sadd.s32 %s15, 1
      %s23 = ssub.s32 %s15, %s22
      %p24 = scmp.eq.s32.totalorder %s23, 0
      %s26 = sadd.s32 %s25, 1
      %s27 = scalar_select %p24, %s25, %s26
      %p30 = pneg %p24
      %p31 = scmp.eq.s32.totalorder %s15, 1
      %p32 = por %p30, %p31
      %p33 = scmp.ne.s32.totalorder %s25, %s28
      %p34 = scmp.eq.s32.totalorder %s15, 0
      %p35 = por %p33, %p34
      %p36 = scmp.ne.s32.totalorder %s25, %s28
      %p37 = scmp.eq.s32.totalorder %s20, 1
      %p38 = por %p36, %p37
      %p39 = scmp.ne.s32.totalorder %s28, %s29
      %p40 = scmp.eq.s32.totalorder %s20, 0
      %p41 = por %p39, %p40
      %p42 = scmp.ne.s32.totalorder %s28, %s29
      %p43 = scmp.eq.s32.totalorder %s21, 1
      %p44 = por %p42, %p43
      %p46 = scmp.ne.s32.totalorder %s29, %s45
      %p47 = scmp.eq.s32.totalorder %s21, 0
      %p48 = por %p46, %p47
      %s50 = sadd.s32 %s49, 1
      %p53 = scmp.eq.s32.totalorder %s15, 1
      %p54 = scmp.ne.s32.totalorder %s49, %s51
      %p55 = scmp.eq.s32.totalorder %s15, 0
      %p56 = por %p54, %p55
      %p57 = scmp.ne.s32.totalorder %s49, %s51
      %p58 = scmp.eq.s32.totalorder %s20, 1
      %p59 = por %p57, %p58
      %p60 = scmp.ne.s32.totalorder %s51, %s52
      %p61 = scmp.eq.s32.totalorder %s20, 0
      %p62 = por %p60, %p61
      %p63 = scmp.ne.s32.totalorder %s51, %s52
      %p64 = scmp.eq.s32.totalorder %s21, 1
      %p65 = por %p63, %p64
      %p67 = scmp.ne.s32.totalorder %s52, %s66
      %p68 = scmp.eq.s32.totalorder %s21, 0
      %p69 = por %p67, %p68
      %s71 = sadd.s32 %s70, 1
      %p74 = scmp.eq.s32.totalorder %s15, 1
      %p75 = scmp.ne.s32.totalorder %s70, %s72
      %p76 = scmp.eq.s32.totalorder %s15, 0
      %p77 = por %p75, %p76
      %p78 = scmp.ne.s32.totalorder %s70, %s72
      %p79 = scmp.eq.s32.totalorder %s20, 1
      %p80 = por %p78, %p79
      %p81 = scmp.ne.s32.totalorder %s72, %s73
      %p82 = scmp.eq.s32.totalorder %s20, 0
      %p83 = por %p81, %p82
      %p84 = scmp.ne.s32.totalorder %s72, %s73
      %p85 = scmp.eq.s32.totalorder %s21, 1
      %p86 = por %p84, %p85
      %p88 = scmp.ne.s32.totalorder %s73, %s87
      %p89 = scmp.eq.s32.totalorder %s21, 0
      %p90 = por %p88, %p89
      %s92 = sadd.s32 %s91, 1
      %p95 = scmp.eq.s32.totalorder %s15, 1
      %p96 = scmp.ne.s32.totalorder %s91, %s93
      %p97 = scmp.eq.s32.totalorder %s15, 0
      %p98 = por %p96, %p97
      %p99 = scmp.ne.s32.totalorder %s91, %s93
      %p100 = scmp.eq.s32.totalorder %s20, 1
      %p101 = por %p99, %p100
      %p102 = scmp.ne.s32.totalorder %s93, %s94
      %p103 = scmp.eq.s32.totalorder %s20, 0
      %p104 = por %p102, %p103
      %p105 = scmp.ne.s32.totalorder %s93, %s94
      %p106 = scmp.eq.s32.totalorder %s21, 1
      %p107 = por %p105, %p106
      %p109 = scmp.ne.s32.totalorder %s94, %s108
      %p110 = scmp.eq.s32.totalorder %s21, 0
      %p111 = por %p109, %p110
      %s113 = sadd.s32 %s112, 1
      %p116 = scmp.eq.s32.totalorder %s15, 1
      %p117 = scmp.ne.s32.totalorder %s112, %s114
      %p118 = scmp.eq.s32.totalorder %s15, 0
      %p119 = por %p117, %p118
      %p120 = scmp.ne.s32.totalorder %s112, %s114
      %p121 = scmp.eq.s32.totalorder %s20, 1
      %p122 = por %p120, %p121
      %p123 = scmp.ne.s32.totalorder %s114, %s115
      %p124 = scmp.eq.s32.totalorder %s20, 0
      %p125 = por %p123, %p124
      %p126 = scmp.ne.s32.totalorder %s114, %s115
      %p127 = scmp.eq.s32.totalorder %s21, 1
      %p128 = por %p126, %p127
      %p130 = scmp.ne.s32.totalorder %s115, %s129
      %p131 = scmp.eq.s32.totalorder %s21, 0
      %p132 = por %p130, %p131
      %s133 = ssub.s32 %s15, %s22
      %p134 = scmp.eq.s32.totalorder %s133, 0
      %s136 = sadd.s32 %s135, 1
      %s137 = scalar_select %p134, %s135, %s136
      %p140 = pneg %p134
      %p141 = scmp.eq.s32.totalorder %s15, 1
      %p142 = por %p140, %p141
      %p143 = scmp.ne.s32.totalorder %s135, %s138
      %p144 = scmp.eq.s32.totalorder %s15, 0
      %p145 = por %p143, %p144
      %p146 = scmp.ne.s32.totalorder %s135, %s138
      %p147 = scmp.eq.s32.totalorder %s20, 1
      %p148 = por %p146, %p147
      %p149 = scmp.ne.s32.totalorder %s138, %s139
      %p150 = scmp.eq.s32.totalorder %s20, 0
      %p151 = por %p149, %p150
      %p152 = scmp.ne.s32.totalorder %s138, %s139
      %p153 = scmp.eq.s32.totalorder %s21, 1
      %p154 = por %p152, %p153
      %p156 = scmp.ne.s32.totalorder %s139, %s155
      %p157 = scmp.eq.s32.totalorder %s21, 0
      %p158 = por %p156, %p157
      %p159 = scmp.le.s32.totalorder 1, %s15
      %p160 = scmp.lt.s32.totalorder %s15, 3
      %p161 = pnand %p159, %p160
      %p162 = pneg %p161
      // Predicated region
      $region9: #{tpu_custom_call.1} parent=5 // pred_check
        _
      $region10: #{tpu_custom_call.1} parent=5 // pred_check_branch
        %164 = sbr.rel (%p161) target = $region12
      $region11: #{tpu_custom_call.1} parent=5 // pred_region
        %s165 = ssub.s32 %s15, 1
        // Predicated region
        $region13: #{tpu_custom_call.1} parent=11 // pred_check
          %p166 = pneg %p62
        $region14: #{tpu_custom_call.1} parent=11 // pred_check_branch
          %168 = sbr.rel (%p166) target = $region16
        $region15: #{tpu_custom_call.1} parent=11 // pred_region
          _
        $region16: #{tpu_custom_call.1} parent=11 // pred_fallthru
          _
        // Predicated region
        $region17: #{tpu_custom_call.1} parent=11 // pred_check
          %p169 = pneg %p83
        $region18: #{tpu_custom_call.1} parent=11 // pred_check_branch
          %171 = sbr.rel (%p169) target = $region20
        $region19: #{tpu_custom_call.1} parent=11 // pred_region
          _
        $region20: #{tpu_custom_call.1} parent=11 // pred_fallthru
          _
        // Predicated region
        $region21: #{tpu_custom_call.1} parent=11 // pred_check
          %p172 = pneg %p104
        $region22: #{tpu_custom_call.1} parent=11 // pred_check_branch
          %174 = sbr.rel (%p172) target = $region24
        $region23: #{tpu_custom_call.1} parent=11 // pred_region
          _
        $region24: #{tpu_custom_call.1} parent=11 // pred_fallthru
          _
        // Predicated region
        $region25: #{tpu_custom_call.1} parent=11 // pred_check
          %p175 = pneg %p125
        $region26: #{tpu_custom_call.1} parent=11 // pred_check_branch
          %177 = sbr.rel (%p175) target = $region28
        $region27: #{tpu_custom_call.1} parent=11 // pred_region
          _
        $region28: #{tpu_custom_call.1} parent=11 // pred_fallthru
          _
      $region12: #{tpu_custom_call.1} parent=5 // pred_fallthru
        _
      %p178 = scmp.lt.s32.totalorder %s15, 2
      // Predicated region
      $region29: #{tpu_custom_call.1} parent=5 // pred_check
        %p179 = pneg %p178
      $region30: #{tpu_custom_call.1} parent=5 // pred_check_branch
        %181 = sbr.rel (%p179) target = $region32
      $region31: #{tpu_custom_call.1} parent=5 // pred_region
        // Predicated region
        $region33: #{tpu_custom_call.1} parent=31 // pred_check
          %p182 = pneg %p35
        $region34: #{tpu_custom_call.1} parent=31 // pred_check_branch
          %184 = sbr.rel (%p182) target = $region36
        $region35: #{tpu_custom_call.1} parent=31 // pred_region
          %p185 = scmp.lt.s32.totalorder %s15, 1
          %s186 = scalar_select %p185, %s15, 1
          %s187 = smul.addr %s186, 8
          %s188 = scalar_lea.vmem %s0, %s187
        $region36: #{tpu_custom_call.1} parent=31 // pred_fallthru
          _
      $region32: #{tpu_custom_call.1} parent=5 // pred_fallthru
        _
      %p189 = scmp.le.s32.totalorder 1, %s15
      %p190 = scmp.lt.s32.totalorder %s15, 3
      %p191 = pnand %p189, %p190
      %p192 = pneg %p191
      // Predicated region
      $region37: #{tpu_custom_call.1} parent=5 // pred_check
        _
      $region38: #{tpu_custom_call.1} parent=5 // pred_check_branch
        %194 = sbr.rel (%p191) target = $region40
      $region39: #{tpu_custom_call.1} parent=5 // pred_region
        %s195 = ssub.s32 %s15, 1
        %p196 = scmp.lt.s32.totalorder %s20, 1
        %s197 = scalar_select %p196, %s20, 1
        %s198 = smul.addr %s197, 8
        %s199 = scalar_lea.vmem %s0, %s198
        %p200 = pneg %p41
        %p201 = pneg %p38
        %p202 = pneg %p62
        %p203 = pneg %p59
        %p204 = pneg %p83
        %p205 = pneg %p80
        %p206 = pneg %p104
        %p207 = pneg %p101
        %p208 = pneg %p125
        %p209 = pneg %p122
        %p210 = pneg %p151
        %p211 = pneg %p148
        %s212 = sand.u32 %s138, 1
        %s213 = scalar_lea.sflag [#allocation4], %s212
        %s214 = sand.u32 %s138, 1
        %s215 = scalar_lea.vmem [#allocation3], %s214
        %p216 = scmp.lt.s32.totalorder %s20, 1
        %s217 = scalar_select %p216, %s20, 1
        %s218 = smul.addr %s217, 8
        %s219 = scalar_lea.vmem %s0, %s218
        %v220 = vld [vmem:[%s219] sm:$0xff]
        %v221 = vld [vmem:[%s1] sm:$0xff]
        %v222 = vld [vmem:[%s1 + $0x8] sm:$0xff]
        %v223 = vld [vmem:[%s1 + $0x10] sm:$0xff]
        %v224 = vld [vmem:[%s1 + $0x18] sm:$0xff]
        %v225 = vld [vmem:[%s2] sm:$0x1]
        %v227 = vperm.slane %v225, 0
        %vm229 = vcmask 261120
        %v231 = vsel %vm229, %v220, 0
        %233 = vmatpush.msra.mxu0 0.0
        %234 = vmatpush.msra.mxu0 0.0
        %235 = vmatpush.msra.mxu0 0.0
        %236 = vmatpush.msra.mxu0 0.0
        %237 = vmatpush.msra.mxu0 0.0
        %238 = vmatpush.msra.mxu0 0.0
        %239 = vmatpush.msra.mxu0 0.0
        %240 = vmatpush.msra.mxu0 0.0
        %241 = vmatpush.msra.mxu0 0.0
        %242 = vmatpush.msra.mxu0 0.0
        %243 = vmatpush.msra.mxu0 0.0
        %244 = vmatpush.msra.mxu0 0.0
        %245 = vmatpush.msra.mxu0 %v224
        %246 = vmatpush.msra.mxu0 %v223
        %247 = vmatpush.msra.mxu0 %v222
        %248 = vmatpush.msra.mxu0 %v221
        %249 = vmatmul.f32.gmra.mxu0 %v231
        %v250 = vpop.f32.mrf.mxu0
        %v251 = vadd.f32 %v227, %v250
        %252 = vdwg.mxu0
        %v253 = vtanh.pop %v251
        %v254 = vld [vmem:[%s3] sm:$0x1]
        %s255 = sld [smem:[#allocation2]]
        %v256 = vstv %s255
        %vm257 = vcmask 130048
        %v259 = vsel %vm257, %v254, 0
        %v262 = vsel %vm257, %v253, 0
        %264 = vmatpush.xpose.msra.mxu0 0.0
        %265 = vmatpush.xpose.msra.mxu0 0.0
        %266 = vmatpush.xpose.msra.mxu0 0.0
        %267 = vmatpush.xpose.msra.mxu0 0.0
        %268 = vmatpush.xpose.msra.mxu0 0.0
        %269 = vmatpush.xpose.msra.mxu0 0.0
        %270 = vmatpush.xpose.msra.mxu0 0.0
        %271 = vmatpush.xpose.msra.mxu0 0.0
        %272 = vmatpush.xpose.msra.mxu0 0.0
        %273 = vmatpush.xpose.msra.mxu0 0.0
        %274 = vmatpush.xpose.msra.mxu0 0.0
        %275 = vmatpush.xpose.msra.mxu0 0.0
        %276 = vmatpush.xpose.msra.mxu0 0.0
        %277 = vmatpush.xpose.msra.mxu0 0.0
        %278 = vmatpush.xpose.msra.mxu0 0.0
        %279 = vmatpush.xpose.msra.mxu0 %v262
        %280 = vmatmul.f32.gmra.mxu0 %v259
        %v281 = vpop.f32.mrf.mxu0
        %v282 = vadd.f32 %v256, %v281
        %283 = vdwg.mxu0
        %vm284 = vcmask 57344
        %v285 = vsel %vm284, %v282, -inf
        %286 = vmax.xlane.f32.xlu0 %v285
        %v287 = vpop.xlane.xlu0 %286
        %v288 = vsub.f32 %v282, %v287
        %v289 = vmul.f32 %v288, 1.442695
        %v290 = vpow.pop %v289
        %v291 = vsel %vm284, %v290, 0.0
        %292 = vadd.xlane.f32.xlu0 %v291
        %v293 = vpop.xlane.xlu0 %292
        %v294 = vrcp.pop %v293
        %v295 = vmul.f32 %v293, %v294
        %v296 = vsub.f32 1.0, %v295
        %v297 = vmul.f32 %v294, %v296
        %v298 = vadd.f32 %v294, %v297
        %vm299 = vweird.f32 %v293
        %vm300 = vweird.f32 %v294
        %vm301 = vmor %vm299, %vm300
        %v302 = vsel %vm301, %v294, %v298
        %v303 = vand.u32 2147483647, %v293
        %vm304 = vcmp.eq.f32.partialorder %v303, 8.507059e+37
        %v305 = vand.u32 %v293, 2147483648
        %v306 = vor.u32 1.1754944e-38, %v305
        %v307 = vsel %vm304, %v306, %v302
        %v308 = vmul.f32 %v290, %v307
        %vm309 = vcmask 64512
        %v311 = vsel %vm309, %v308, 0
        %313 = vmatpush.msra.mxu0 0.0
        %314 = vmatpush.msra.mxu0 0.0
        %315 = vmatpush.msra.mxu0 0.0
        %316 = vmatpush.msra.mxu0 0.0
        %317 = vmatpush.msra.mxu0 0.0
        %318 = vmatpush.msra.mxu0 0.0
        %319 = vmatpush.msra.mxu0 0.0
        %320 = vmatpush.msra.mxu0 0.0
        %321 = vmatpush.msra.mxu0 0.0
        %322 = vmatpush.msra.mxu0 0.0
        %323 = vmatpush.msra.mxu0 0.0
        %324 = vmatpush.msra.mxu0 0.0
        %325 = vmatpush.msra.mxu0 0.0
        %326 = vmatpush.msra.mxu0 0.0
        %327 = vmatpush.msra.mxu0 0.0
        %328 = vmatpush.msra.mxu0 %v220
        %329 = vmatmul.f32.gmra.mxu0 %v311
        %v330 = vpop.f32.mrf.mxu0
        %v331 = vadd.f32 0.0, %v330
        %332 = vdwg.mxu0
        %vm333 = vcmask 253952
        %334 = vst.msk [vmem:[%s215] sm:$0x1] %vm333, %v331
        %s335 = sand.u32 %s138, 1
        %s336 = scalar_lea.sflag [#allocation4], %s335
        %s337 = sand.u32 %s138, 1
        %s338 = scalar_lea.vmem [#allocation3], %s337
        // Predicated region
        $region41: #{tpu_custom_call.1} parent=39 // pred_check
          %p339 = pneg %p148
        $region42: #{tpu_custom_call.1} parent=39 // pred_check_branch
          %341 = sbr.rel (%p339) target = $region44
        $region43: #{tpu_custom_call.1} parent=39 // pred_region
          %343 = vsyncadd %s336, 0
          %s344 = scalar_lea.hbm %s5, %s20
          %s346 = sshll.u32 %s338, 4
          %s347 = int_to_ptr.vmem [resolvable:$true] %s346
          %s348 = sshll.u32 %s344, 4
          %s349 = int_to_ptr.hbm [resolvable:$true] %s348
          %351 = dma.vmem_to_hbm [thread:$0]  %s347, 16, %s349, %s336
        $region44: #{tpu_custom_call.1} parent=39 // pred_fallthru
          _
      $region40: #{tpu_custom_call.1} parent=5 // pred_fallthru
        _
      %p352 = scmp.le.s32.totalorder 2, %s15
      // Predicated region
      $region45: #{tpu_custom_call.1} parent=5 // pred_check
        %p353 = pneg %p352
      $region46: #{tpu_custom_call.1} parent=5 // pred_check_branch
        %355 = sbr.rel (%p353) target = $region48
      $region47: #{tpu_custom_call.1} parent=5 // pred_region
        %s356 = ssub.s32 %s15, 2
        // Predicated region
        $region49: #{tpu_custom_call.1} parent=47 // pred_check
          %p357 = pneg %p154
        $region50: #{tpu_custom_call.1} parent=47 // pred_check_branch
          %359 = sbr.rel (%p357) target = $region52
        $region51: #{tpu_custom_call.1} parent=47 // pred_region
          %s360 = sand.u32 %s139, 1
          %s361 = scalar_lea.sflag [#allocation4], %s360
          %s362 = sand.u32 %s139, 1
          %s363 = scalar_lea.vmem [#allocation3], %s362
          %365 = dma.done %s361, 16
        $region52: #{tpu_custom_call.1} parent=47 // pred_fallthru
          _
      $region48: #{tpu_custom_call.1} parent=5 // pred_fallthru
        _
    $region6: #{tpu_custom_call.1} parent=1 // loop_footer
      %s19 = sadd.s32 1, %s15
    $region7: #{tpu_custom_call.1} parent=1 // loop_footer_branch
      %14 = sbr.rel target = $region3
    $region8: #{tpu_custom_call.1} parent=1 // loop_exit
      _
    %366 = vsyncpa [#allocation4], 1
    %s367 = scalar_lea.sflag [#allocation4], 1
    %368 = vsyncpa %s367, 1

</llo_original>
